<compile_context>
chip_gen: v7x
topology: tpu7x:2x2x1
jax: 0.10.0
libtpu: 0.0.40
codegen_flags: <defaults>
</compile_context>

<pallas_src>
import jax
import jax.numpy as jnp
import numpy as np
from jax import lax
from jax.experimental import pallas as pl
from jax.experimental.pallas import tpu as pltpu


def _focal_loss_kernel(pred_ref, gt_ref, loss_ref, npos_ref):
    """One grid step == (one channel block, one HW tile).

    pred_ref : (B, c_blk, hw_tile)  VMEM   predictions in (0, 1)
    gt_ref   : (c_blk, hw_tile)     VMEM   gt[0] heatmap for these channels
    loss_ref : (c_blk, 128)         per-channel fused (pos + neg) loss sum
    npos_ref : (c_blk, 128)         per-channel positive count (from gt[0])
    """
    hw = pl.program_id(1)

    @pl.when(hw == 0)
    def _():
        loss_ref[...] = jnp.zeros_like(loss_ref)
        npos_ref[...] = jnp.zeros_like(npos_ref)

    gt = gt_ref[...].astype(jnp.float32)                 # (c_blk, hw_tile)
    pos_mask = gt == 1.0
    one_m_gt = 1.0 - gt
    neg_w = (one_m_gt * one_m_gt) * (one_m_gt * one_m_gt)      # (1 - gt)^4
    neg_coeff = jnp.where(gt < 1.0, neg_w, 0.0)          # keep the gt<1 guard

    c_blk, hw_tile = gt.shape
    batch = pred_ref.shape[0]

    def body(b, acc):
        pred = pred_ref[b].astype(jnp.float32)           # (c_blk, hw_tile)
        one_m_pred = 1.0 - pred
        # Single log per element: log(pred) at positives, log(1 - pred) else.
        lg = jnp.log(jnp.where(pos_mask, pred, one_m_pred))
        w = jnp.where(pos_mask,
                      one_m_pred * one_m_pred,
                      (pred * pred) * neg_coeff)
        return acc + lg * w

    partial = lax.fori_loop(0, batch, body,
                            jnp.zeros((c_blk, hw_tile), jnp.float32),
                            unroll=True)

    # One XLU lane-reduce per step; accumulate into the resident output block.
    per_chan = jnp.sum(partial, axis=-1, keepdims=True)          # (c_blk, 1)
    loss_ref[...] += jnp.broadcast_to(per_chan, loss_ref.shape)

    # num_pos is counted from gt[0] only (matches torch's gt.data[0]).
    npos = jnp.sum(pos_mask.astype(jnp.float32), axis=-1, keepdims=True)
    npos_ref[...] += jnp.broadcast_to(npos, npos_ref.shape)


def _vmem_budget():
    """(vmem_limit_bytes, per-step block budget) sized for the local chip."""
    try:
        cap = pltpu.get_tpu_info().vmem_capacity_bytes
    except Exception:
        cap = 64 << 20                       # conservative (v7x per-TC size)
    limit = min(cap // 2, 48 << 20)          # 32 MiB on v7x, 48 MiB v5e/v6e
    return limit, limit // 4


def _choose_hw_tile(hw, max_tile=2048):
    """Largest multiple-of-128 divisor of HW up to max_tile, else full HW."""
    if hw <= max_tile:
        return hw, 1
    t = (max_tile // 128) * 128
    while t >= 128:
        if hw % t == 0:
            return t, hw // t
        t -= 128
    # TODO(synk): ragged HW with no 128-multiple divisor — fall back to one
    # full-HW tile (correct; just a larger per-step working set).
    return hw, 1


def _choose_c_block(batch, channels, hw_tile, itemsize, block_budget_bytes):
    """Largest channel block (divisor of C, multiple of 8 or C) fitting budget.

    Budget counts double-buffered inputs in their native dtype plus the f32
    elementwise working set (~8 row-sized temporaries).
    """
    per_chan = 2 * (batch + 1) * hw_tile * itemsize + 8 * hw_tile * 4
    max_c = max(1, block_budget_bytes // per_chan)

    valid = [channels] + [d for d in range(8, channels, 8) if channels % d == 0]
    fitting = [d for d in valid if d <= max_c]
    c_blk = max(fitting) if fitting else min(valid)

    # Give megacore (v7x: 2 TensorCores) >= 2 parallel channel blocks when it
    # costs nothing (one extra grid step is ~0.35us on single-TC chips).
    if c_blk == channels and channels % 16 == 0:
        c_blk = channels // 2
    return c_blk, channels // c_blk


def focal_loss(pred, gt, weights_list=None):
    """Pallas implementation of FocalLoss.forward(out, target, weights_list).

    pred, gt: (B, C, H, W) float (NCHW, matching the PyTorch module).
    Returns a scalar float32 loss.
    """
    B, C, H, W = pred.shape
    HW = H * W

    # Free, row-major reshapes only — pred streams from HBM exactly once.
    pred_r = pred.reshape(B, C, HW)
    gt_r = gt[0].reshape(C, HW)               # == gt.data[0] in the torch code

    vmem_limit, block_budget = _vmem_budget()
    hw_tile, n_hw = _choose_hw_tile(HW)
    itemsize = np.dtype(pred.dtype).itemsize
    c_blk, n_cb = _choose_c_block(B, C, hw_tile, itemsize, block_budget)

    out_shapes = (
        jax.ShapeDtypeStruct((C, 128), jnp.float32),   # per-channel loss sum
        jax.ShapeDtypeStruct((C, 128), jnp.float32),   # per-channel num_pos
    )

    grid_spec = pltpu.PrefetchScalarGridSpec(
        num_scalar_prefetch=0,
        grid=(n_cb, n_hw),                    # reduction (HW) axis last
        in_specs=[
            pl.BlockSpec((B, c_blk, hw_tile), lambda cb, hw: (0, cb, hw)),
            pl.BlockSpec((c_blk, hw_tile), lambda cb, hw: (cb, hw)),
        ],
        out_specs=[
            pl.BlockSpec((c_blk, 128), lambda cb, hw: (cb, 0)),
            pl.BlockSpec((c_blk, 128), lambda cb, hw: (cb, 0)),
        ],
    )

    loss_out, npos_out = pl.pallas_call(
        _focal_loss_kernel,
        out_shape=out_shapes,
        grid_spec=grid_spec,
        compiler_params=pltpu.CompilerParams(
            dimension_semantics=("parallel", "arbitrary"),
            vmem_limit_bytes=vmem_limit,
        ),
    )(pred_r, gt_r)

    per_chan_loss = loss_out[:, 0]                   # (C,) fused pos+neg sums
    num_pos = jnp.sum(npos_out[:, 0])

    if weights_list is None:
        total = jnp.sum(per_chan_loss)
    else:
        w = jnp.asarray(weights_list, dtype=jnp.float32)
        total = jnp.sum(per_chan_loss * w)

    # torch: if num_pos > 2: loss = -(pos + neg) / num_pos  else: loss = 0.0
    safe_den = jnp.where(num_pos > 2, num_pos, jnp.float32(1.0))
    return jnp.where(num_pos > 2, -total / safe_den, jnp.float32(0.0))


def focal_loss_ref(pred, gt, weights_list=None):
    """Pure-JAX reference mirroring the PyTorch _neg_loss exactly."""
    gt0 = gt[0]
    pos_inds = (gt0 == 1.0).astype(jnp.float32)
    neg_inds = (gt0 < 1.0).astype(jnp.float32)
    neg_weights = (1.0 - gt0) ** 4
    pos_loss = jnp.log(pred) * (1.0 - pred) ** 2 * pos_inds
    neg_loss = jnp.log(1.0 - pred) * pred ** 2 * neg_weights * neg_inds
    num_pos = pos_inds.sum()
    if weights_list is None:
        p = pos_loss.sum()
        n = neg_loss.sum()
    else:
        w = jnp.asarray(weights_list, dtype=jnp.float32)
        p = jnp.sum(jnp.sum(pos_loss, axis=(0, 2, 3)) * w)
        n = jnp.sum(jnp.sum(neg_loss, axis=(0, 2, 3)) * w)
    return jnp.where(num_pos > 2, -(p + n) / num_pos, jnp.float32(0.0))


def _make_inputs(key, B, C, H, W):
    k1, k2, k3 = jax.random.split(key, 3)
    # Predictions strictly in (0, 1) so log() terms are finite.
    pred = jax.nn.sigmoid(jax.random.normal(k1, (B, C, H, W), dtype=jnp.float32))
    # Gaussian-heatmap-like target in [0, 1) with some exact 1.0 peaks.
    gt = jax.random.uniform(k2, (B, C, H, W), dtype=jnp.float32) * 0.98
    peak_mask = jax.random.uniform(k3, (B, C, H, W)) < 0.02
    gt = jnp.where(peak_mask, 1.0, gt)
    # Guarantee > 2 positives in gt[0] so the main branch is exercised.
    gt = gt.at[0, :, 0, 0:4].set(1.0)
    return pred, gt


if __name__ == "__main__":
    key = jax.random.PRNGKey(0)
    k_a, k_b, k_c = jax.random.split(key, 3)

    # Case 1: base shape, unweighted (single grid step).
    pred, gt = _make_inputs(k_a, 2, 4, 16, 16)
    loss = jax.block_until_ready(focal_loss(pred, gt))
    np.testing.assert_allclose(np.asarray(loss),
                               np.asarray(focal_loss_ref(pred, gt)),
                               rtol=5e-4, atol=1e-5)

    # Case 1b: per-channel weighted path (weights_list argument of forward()).
    weights_list = [1.0, 0.5, 2.0, 0.25]
    loss_w = jax.block_until_ready(focal_loss(pred, gt, weights_list))
    np.testing.assert_allclose(np.asarray(loss_w),
                               np.asarray(focal_loss_ref(pred, gt, weights_list)),
                               rtol=5e-4, atol=1e-5)

    # Case 2: more channels -> multiple "parallel" channel blocks, weighted.
    pred2, gt2 = _make_inputs(k_b, 2, 16, 16, 16)
    w2 = [0.5 + 0.1 * i for i in range(16)]
    loss2 = jax.block_until_ready(focal_loss(pred2, gt2, w2))
    np.testing.assert_allclose(np.asarray(loss2),
                               np.asarray(focal_loss_ref(pred2, gt2, w2)),
                               rtol=5e-4, atol=1e-5)

    # Case 3: larger spatial extent -> multiple HW tiles on the "arbitrary"
    # reduction axis (exercises the pl.when init + accumulate path).
    pred3, gt3 = _make_inputs(k_c, 2, 8, 64, 64)
    loss3 = jax.block_until_ready(focal_loss(pred3, gt3))
    np.testing.assert_allclose(np.asarray(loss3),
                               np.asarray(focal_loss_ref(pred3, gt3)),
                               rtol=5e-4, atol=1e-5)

    print("KERNEL_OK")
</pallas_src>

<mosaic_0001>
module attributes {stable_mosaic.version = 11 : i64} {
  func.func @_focal_loss_kernel(%arg0: i32, %arg1: i32, %arg2: memref<2x4x256xf32, #tpu.memory_space<vmem>>, %arg3: memref<4x256xf32, #tpu.memory_space<vmem>>, %arg4: memref<4x128xf32, #tpu.memory_space<vmem>>, %arg5: memref<4x128xf32, #tpu.memory_space<vmem>>) attributes {dimension_semantics = [#tpu.dimension_semantics<parallel>, #tpu.dimension_semantics<arbitrary>], iteration_bounds = array<i64: 1, 1>, scalar_prefetch = 0 : i64, scratch_operands = 0 : i64, tpu.core_type = #tpu.core_type<tc>, window_params = [{transform_indices = @transform_0, window_bounds = array<i64: 2, 4, 256>}, {transform_indices = @transform_1, window_bounds = array<i64: 4, 256>}, {transform_indices = @transform_2, window_bounds = array<i64: 4, 128>}, {transform_indices = @transform_3, window_bounds = array<i64: 4, 128>}]} {
    %c0_i32 = arith.constant 0 : i32
    %0 = arith.cmpi eq, %arg1, %c0_i32 : i32
    %1 = arith.extui %0 : i1 to i32
    %c0_i32_0 = arith.constant 0 : i32
    %2 = arith.cmpi ne, %1, %c0_i32_0 : i32
    scf.if %2 {
      %cst_23 = arith.constant 0.000000e+00 : f32
      %58 = vector.broadcast %cst_23 : f32 to vector<4x128xf32>
      %c0_24 = arith.constant 0 : index
      %c0_25 = arith.constant 0 : index
      %59 = vector.load %arg4[%c0_24, %c0_25] : memref<4x128xf32, #tpu.memory_space<vmem>>, vector<4x128xf32>
      tpu.vector_store %arg4[%c0_24, %c0_25], %58 {strides = array<i32>} : memref<4x128xf32, #tpu.memory_space<vmem>>, vector<4x128xf32>,
      %cst_26 = arith.constant 0.000000e+00 : f32
      %60 = vector.broadcast %cst_26 : f32 to vector<4x128xf32>
      %c0_27 = arith.constant 0 : index
      %c0_28 = arith.constant 0 : index
      %61 = vector.load %arg5[%c0_27, %c0_28] : memref<4x128xf32, #tpu.memory_space<vmem>>, vector<4x128xf32>
      tpu.vector_store %arg5[%c0_27, %c0_28], %60 {strides = array<i32>} : memref<4x128xf32, #tpu.memory_space<vmem>>, vector<4x128xf32>,
    } else {
    }
    %c0 = arith.constant 0 : index
    %c0_1 = arith.constant 0 : index
    %3 = vector.load %arg3[%c0, %c0_1] : memref<4x256xf32, #tpu.memory_space<vmem>>, vector<4x256xf32>
    %cst = arith.constant 1.000000e+00 : f32
    %4 = vector.broadcast %cst : f32 to vector<4x256xf32>
    %5 = arith.cmpf oeq, %3, %4 : vector<4x256xf32>
    %cst_2 = arith.constant 1.000000e+00 : f32
    %6 = vector.broadcast %cst_2 : f32 to vector<4x256xf32>
    %7 = arith.subf %6, %3 : vector<4x256xf32>
    %8 = arith.mulf %7, %7 : vector<4x256xf32>
    %9 = arith.mulf %7, %7 : vector<4x256xf32>
    %10 = arith.mulf %8, %9 : vector<4x256xf32>
    %cst_3 = arith.constant 1.000000e+00 : f32
    %11 = vector.broadcast %cst_3 : f32 to vector<4x256xf32>
    %12 = arith.cmpf olt, %3, %11 : vector<4x256xf32>
    %cst_4 = arith.constant 0.000000e+00 : f32
    %13 = vector.broadcast %cst_4 : f32 to vector<4x256xf32>
    %14 = arith.select %12, %10, %13 : vector<4x256xi1>, vector<4x256xf32>
    %cst_5 = arith.constant 0.000000e+00 : f32
    %15 = vector.broadcast %cst_5 : f32 to vector<4x256xf32>
    %c0_i32_6 = arith.constant 0 : i32
    %16 = arith.index_cast %c0_i32_6 : i32 to index
    %c0_7 = arith.constant 0 : index
    %c0_8 = arith.constant 0 : index
    %17 = vector.load %arg2[%16, %c0_7, %c0_8] : memref<2x4x256xf32, #tpu.memory_space<vmem>>, vector<1x4x256xf32>
    %18 = vector.shape_cast %17 : vector<1x4x256xf32> to vector<4x256xf32>
    %cst_9 = arith.constant 1.000000e+00 : f32
    %19 = vector.broadcast %cst_9 : f32 to vector<4x256xf32>
    %20 = arith.subf %19, %18 : vector<4x256xf32>
    %21 = arith.select %5, %18, %20 : vector<4x256xi1>, vector<4x256xf32>
    %22 = math.log %21 : vector<4x256xf32>
    %23 = arith.mulf %20, %20 : vector<4x256xf32>
    %24 = arith.mulf %18, %18 : vector<4x256xf32>
    %25 = arith.mulf %24, %14 : vector<4x256xf32>
    %26 = arith.select %5, %23, %25 : vector<4x256xi1>, vector<4x256xf32>
    %27 = arith.mulf %22, %26 : vector<4x256xf32>
    %28 = arith.addf %15, %27 : vector<4x256xf32>
    %c1_i32 = arith.constant 1 : i32
    %29 = arith.index_cast %c1_i32 : i32 to index
    %c0_10 = arith.constant 0 : index
    %c0_11 = arith.constant 0 : index
    %30 = vector.load %arg2[%29, %c0_10, %c0_11] : memref<2x4x256xf32, #tpu.memory_space<vmem>>, vector<1x4x256xf32>
    %31 = vector.shape_cast %30 : vector<1x4x256xf32> to vector<4x256xf32>
    %cst_12 = arith.constant 1.000000e+00 : f32
    %32 = vector.broadcast %cst_12 : f32 to vector<4x256xf32>
    %33 = arith.subf %32, %31 : vector<4x256xf32>
    %34 = arith.select %5, %31, %33 : vector<4x256xi1>, vector<4x256xf32>
    %35 = math.log %34 : vector<4x256xf32>
    %36 = arith.mulf %33, %33 : vector<4x256xf32>
    %37 = arith.mulf %31, %31 : vector<4x256xf32>
    %38 = arith.mulf %37, %14 : vector<4x256xf32>
    %39 = arith.select %5, %36, %38 : vector<4x256xi1>, vector<4x256xf32>
    %40 = arith.mulf %35, %39 : vector<4x256xf32>
    %41 = arith.addf %28, %40 : vector<4x256xf32>
    %c2_i32 = arith.constant 2 : i32
    %cst_13 = arith.constant dense<0.000000e+00> : vector<4xf32>
    %42 = vector.multi_reduction <add>, %41, %cst_13 [1] : vector<4x256xf32> to vector<4xf32>
    %43 = vector.shape_cast %42 : vector<4xf32> to vector<4x1xf32>
    %c0_14 = arith.constant 0 : index
    %c0_15 = arith.constant 0 : index
    %44 = vector.load %arg4[%c0_14, %c0_15] : memref<4x128xf32, #tpu.memory_space<vmem>>, vector<4x128xf32>
    %45 = vector.shape_cast %43 : vector<4x1xf32> to vector<4x1xf32>
    %46 = vector.broadcast %45 : vector<4x1xf32> to vector<4x128xf32>
    %47 = arith.addf %44, %46 : vector<4x128xf32>
    %c0_16 = arith.constant 0 : index
    %c0_17 = arith.constant 0 : index
    %48 = vector.load %arg4[%c0_16, %c0_17] : memref<4x128xf32, #tpu.memory_space<vmem>>, vector<4x128xf32>
    tpu.vector_store %arg4[%c0_16, %c0_17], %47 {strides = array<i32>} : memref<4x128xf32, #tpu.memory_space<vmem>>, vector<4x128xf32>,
    %49 = arith.extui %5 : vector<4x256xi1> to vector<4x256xi32>
    %50 = arith.sitofp %49 : vector<4x256xi32> to vector<4x256xf32>
    %cst_18 = arith.constant dense<0.000000e+00> : vector<4xf32>
    %51 = vector.multi_reduction <add>, %50, %cst_18 [1] : vector<4x256xf32> to vector<4xf32>
    %52 = vector.shape_cast %51 : vector<4xf32> to vector<4x1xf32>
    %c0_19 = arith.constant 0 : index
    %c0_20 = arith.constant 0 : index
    %53 = vector.load %arg5[%c0_19, %c0_20] : memref<4x128xf32, #tpu.memory_space<vmem>>, vector<4x128xf32>
    %54 = vector.shape_cast %52 : vector<4x1xf32> to vector<4x1xf32>
    %55 = vector.broadcast %54 : vector<4x1xf32> to vector<4x128xf32>
    %56 = arith.addf %53, %55 : vector<4x128xf32>
    %c0_21 = arith.constant 0 : index
    %c0_22 = arith.constant 0 : index
    %57 = vector.load %arg5[%c0_21, %c0_22] : memref<4x128xf32, #tpu.memory_space<vmem>>, vector<4x128xf32>
    tpu.vector_store %arg5[%c0_21, %c0_22], %56 {strides = array<i32>} : memref<4x128xf32, #tpu.memory_space<vmem>>, vector<4x128xf32>,
    return
  }
  func.func @transform_0(%arg0: i32, %arg1: i32) -> (i32, i32, i32) {
    %c0_i32 = arith.constant 0 : i32
    %c0_i32_0 = arith.constant 0 : i32
    return %c0_i32, %arg0, %arg1 : i32, i32, i32
  }
  func.func @transform_1(%arg0: i32, %arg1: i32) -> (i32, i32) {
    %c0_i32 = arith.constant 0 : i32
    return %arg0, %arg1 : i32, i32
  }
  func.func @transform_2(%arg0: i32, %arg1: i32) -> (i32, i32) {
    %c0_i32 = arith.constant 0 : i32
    %c0_i32_0 = arith.constant 0 : i32
    return %arg0, %c0_i32 : i32, i32
  }
  func.func @transform_3(%arg0: i32, %arg1: i32) -> (i32, i32) {
    %c0_i32 = arith.constant 0 : i32
    %c0_i32_0 = arith.constant 0 : i32
    return %arg0, %c0_i32 : i32, i32
  }
}

</mosaic_0001>

<llo_original>
// kernel: tpu_custom_call.1
$region0: #{tpu_custom_call.1}
  #allocation0 [shape = 'u32[]', space=smem, size = 0x4, offset = 0x4, fixed_abs, tag = 'smem constant byte address 0x4 - core index']
  #allocation1 [shape = 'u32[144,128]{1,0:T(1,128)}', space=vmem, size = 0x12000, scoped, tag = 'internal scratch']
  %s0 = inlined_call_operand.hbm [shape: f32[2,4,256], index: 0, kind: input, shape index: {}]
  %s1 = inlined_call_operand.hbm [shape: f32[4,256], index: 1, kind: input, shape index: {}]
  %s2 = inlined_call_operand.hbm [shape: f32[4,128], index: 2, kind: output, shape index: {0}]
  %s3 = inlined_call_operand.hbm [shape: f32[4,128], index: 3, kind: output, shape index: {1}]
  %4 = xla_tuple %s2, %s3
  %s5 = sld [smem:[#allocation0]]
  $region38: #{tpu_custom_call.1} parent=0
    _
  %s7 = ssub.s32 1, %s5
  %s8 = scalar_select 0, %s7, %s5
  $region1: #{tpu_custom_call.1} parent=0
    #allocation2 [shape = 'u8[8192]{0}', space=vmem, size = 0x2000, scoped, tag = 'input window, operand 0, single buffered']
    #allocation3 [shape = 's32[1]{0}', space=sflag, size = 0x4, scoped, tag = 'scoped memory for tpu_custom_call.1']
    #allocation4 [shape = 's32[1]{0}', space=sflag, size = 0x4, scoped, tag = 'scoped memory for tpu_custom_call.1']
    #allocation5 [shape = 'u8[4096]{0}', space=vmem, size = 0x1000, scoped, tag = 'input window, operand 1, single buffered']
    #allocation6 [shape = 's32[1]{0}', space=sflag, size = 0x4, scoped, tag = 'scoped memory for tpu_custom_call.1']
    #allocation7 [shape = 'u8[2048]{0}', space=vmem, size = 0x800, scoped, tag = 'output window, operand 0, single buffered']
    #allocation8 [shape = 'u8[2048]{0}', space=vmem, size = 0x800, scoped, tag = 'output window, operand 1, single buffered']
    #allocation9 [shape = 's32[1]{0}', space=sflag, size = 0x4, scoped, tag = 'scoped memory for tpu_custom_call.1']
    %9 = vsyncpa [#allocation3], 0
    %10 = vsyncpa [#allocation6], 0
    %11 = vsyncpa [#allocation4], 0
    %12 = vsyncpa [#allocation9], 0
    // Predicated region
    $region2: #{tpu_custom_call.1} parent=1 // pred_check
      _
    $region3: #{tpu_custom_call.1} parent=1 // pred_check_branch
      %14 = sbr.rel (0) target = $region5
    $region4: #{tpu_custom_call.1} parent=1 // pred_region
      %s16 = ssub.s32 256, 256
      %17 = vsyncadd [#allocation3], %s16
      %s18 = sshll.u32 [#allocation2], 4
      %s19 = int_to_ptr.vmem [resolvable:$true] %s18
      %24 = dma.hbm_to_vmem [thread:$0]  %s0, 256, %s19, [#allocation3], 128, 128, 8
    $region5: #{tpu_custom_call.1} parent=1 // pred_fallthru
      _
    // Predicated region
    $region6: #{tpu_custom_call.1} parent=1 // pred_check
      _
    $region7: #{tpu_custom_call.1} parent=1 // pred_check_branch
      %26 = sbr.rel (0) target = $region9
    $region8: #{tpu_custom_call.1} parent=1 // pred_region
      %s28 = ssub.s32 128, 128
      %29 = vsyncadd [#allocation6], %s28
      %s31 = sshll.u32 [#allocation5], 4
      %s32 = int_to_ptr.vmem [resolvable:$true] %s31
      %34 = dma.hbm_to_vmem [thread:$0]  %s1, 128, %s32, [#allocation6]
    $region9: #{tpu_custom_call.1} parent=1 // pred_fallthru
      _
    // Predicated region
    $region10: #{tpu_custom_call.1} parent=1 // pred_check
      _
    $region11: #{tpu_custom_call.1} parent=1 // pred_check_branch
      %36 = sbr.rel (0) target = $region13
    $region12: #{tpu_custom_call.1} parent=1 // pred_region
      %37 = dma.done [#allocation3], 256
    $region13: #{tpu_custom_call.1} parent=1 // pred_fallthru
      _
    // Predicated region
    $region14: #{tpu_custom_call.1} parent=1 // pred_check
      _
    $region15: #{tpu_custom_call.1} parent=1 // pred_check_branch
      %39 = sbr.rel (0) target = $region17
    $region16: #{tpu_custom_call.1} parent=1 // pred_region
      %40 = dma.done [#allocation6], 128
    $region17: #{tpu_custom_call.1} parent=1 // pred_fallthru
      _
    %p41 = scmp.eq.s32.totalorder 0, 0
    // Predicated region
    $region18: #{tpu_custom_call.1} parent=1 // pred_check
      %p42 = pneg %p41
    $region19: #{tpu_custom_call.1} parent=1 // pred_check_branch
      %44 = sbr.rel (%p42) target = $region21
    $region20: #{tpu_custom_call.1} parent=1 // pred_region
      %45 = vst [vmem:[#allocation7] sm:$0xf] 0.0
      %46 = vst [vmem:[#allocation8] sm:$0xf] 0.0
    $region21: #{tpu_custom_call.1} parent=1 // pred_fallthru
      _
    %v47 = vld [vmem:[#allocation5] sm:$0xff]
    %vm48 = vcmp.eq.f32.partialorder %v47, 1.0
    %v49 = vsub.f32 1.0, %v47
    %v50 = vmul.f32 %v49, %v49
    %v51 = vmul.f32 %v50, %v50
    %vm52 = vcmp.lt.f32.partialorder %v47, 1.0
    %v53 = vsel %vm52, %v51, 0.0
    %v54 = vld [vmem:[#allocation2] sm:$0xff]
    %v55 = vsub.f32 1.0, %v54
    %v56 = vsel %vm48, %v54, %v55
    %v57 = vlog2.pop %v56
    %v58 = vmul.f32 %v57, 0.6931472
    %v59 = vmul.f32 %v55, %v55
    %v60 = vmul.f32 %v54, %v54
    %v61 = vmul.f32 %v60, %v53
    %v62 = vsel %vm48, %v59, %v61
    %v63 = vmul.f32 %v58, %v62
    %v64 = vadd.f32 %v63, 0.0
    %s65 = scalar_lea.vmem [#allocation2], 8
    %v66 = vld [vmem:[%s65] sm:$0xff]
    %v67 = vsub.f32 1.0, %v66
    %v68 = vsel %vm48, %v66, %v67
    %v69 = vlog2.pop %v68
    %v70 = vmul.f32 %v69, 0.6931472
    %v71 = vmul.f32 %v67, %v67
    %v72 = vmul.f32 %v66, %v66
    %v73 = vmul.f32 %v72, %v53
    %v74 = vsel %vm48, %v71, %v73
    %v75 = vmul.f32 %v70, %v74
    %v76 = vadd.f32 %v64, %v75
    %v78 = vcombine.high %v76, %v76
    %vm80 = vcmask 1043456
    %v81 = vsel %vm80, %v76, 0.0
    %v82 = vsel %vm80, %v78, 0.0
    %v83 = vadd.f32 %v81, %v82
    %84 = vadd.xlane.f32.xlu0 %v83
    %v85 = vpop.xlane.xlu0 %84
    %v86 = vld [vmem:[#allocation7] sm:$0xf]
    %v87 = vadd.f32 %v86, %v85
    %88 = vst [vmem:[#allocation7] sm:$0xf] %v87
    %v89 = vsel %vm48, 1, 0
    %v90 = vcvt.s32.f32 %v89
    %v92 = vcombine.high %v90, %v90
    %v94 = vsel %vm80, %v90, 0.0
    %v95 = vsel %vm80, %v92, 0.0
    %v96 = vadd.f32 %v94, %v95
    %97 = vadd.xlane.f32.xlu0 %v96
    %v98 = vpop.xlane.xlu0 %97
    %v99 = vld [vmem:[#allocation8] sm:$0xf]
    %v100 = vadd.f32 %v99, %v98
    %101 = vst [vmem:[#allocation8] sm:$0xf] %v100
    // Predicated region
    $region22: #{tpu_custom_call.1} parent=1 // pred_check
      _
    $region23: #{tpu_custom_call.1} parent=1 // pred_check_branch
      %103 = sbr.rel (0) target = $region25
    $region24: #{tpu_custom_call.1} parent=1 // pred_region
      %s105 = ssub.s32 64, 64
      %106 = vsyncadd [#allocation4], %s105
      %s108 = sshll.u32 [#allocation7], 4
      %s109 = int_to_ptr.vmem [resolvable:$true] %s108
      %111 = dma.vmem_to_hbm [thread:$0]  %s109, 64, %s2, [#allocation4]
    $region25: #{tpu_custom_call.1} parent=1 // pred_fallthru
      _
    // Predicated region
    $region26: #{tpu_custom_call.1} parent=1 // pred_check
      _
    $region27: #{tpu_custom_call.1} parent=1 // pred_check_branch
      %113 = sbr.rel (0) target = $region29
    $region28: #{tpu_custom_call.1} parent=1 // pred_region
      %s115 = ssub.s32 64, 64
      %116 = vsyncadd [#allocation9], %s115
      %s118 = sshll.u32 [#allocation8], 4
      %s119 = int_to_ptr.vmem [resolvable:$true] %s118
      %121 = dma.vmem_to_hbm [thread:$0]  %s119, 64, %s3, [#allocation9]
    $region29: #{tpu_custom_call.1} parent=1 // pred_fallthru
      _
    // Predicated region
    $region30: #{tpu_custom_call.1} parent=1 // pred_check
      _
    $region31: #{tpu_custom_call.1} parent=1 // pred_check_branch
      %123 = sbr.rel (0) target = $region33
    $region32: #{tpu_custom_call.1} parent=1 // pred_region
      %124 = dma.done [#allocation4], 64
    $region33: #{tpu_custom_call.1} parent=1 // pred_fallthru
      _
    // Predicated region
    $region34: #{tpu_custom_call.1} parent=1 // pred_check
      _
    $region35: #{tpu_custom_call.1} parent=1 // pred_check_branch
      %126 = sbr.rel (0) target = $region37
    $region36: #{tpu_custom_call.1} parent=1 // pred_region
      %127 = dma.done [#allocation9], 64
    $region37: #{tpu_custom_call.1} parent=1 // pred_fallthru
      _
    %128 = vsyncpa [#allocation3], 1
    %129 = vsyncpa [#allocation6], 1
    %130 = vsyncpa [#allocation4], 1
    %131 = vsyncpa [#allocation9], 1

</llo_original>
